<compile_context>
chip_gen: v7x
topology: tpu7x:2x2x1
jax: 0.10.0
libtpu: 0.0.40
codegen_flags: <defaults>
</compile_context>

<pallas_src>
import math

import jax
import jax.numpy as jnp
from jax.experimental import pallas as pl
from jax.experimental.pallas import tpu as pltpu


_LANE = 128           # lane width (last dim alignment)
_SUBLANE_BF16 = 16    # bf16 min sublane tile
_TM_MAX = 512
_TN_MAX = 256
_TK_MAX = 1024


def _round_up(x, m):
    return ((x + m - 1) // m) * m


def _divisor_tile(padded, unit, max_tile):
    """Largest multiple of `unit` that divides `padded` and is <= max_tile.

    `padded` must already be a multiple of `unit`.  This avoids rounding a
    dimension up to a full max-size tile (no zero-block DMA / MXU work).
    """
    n = padded // unit
    best = 1
    d = 1
    while d * d <= n:
        if n % d == 0:
            for cand in (d, n // d):
                if cand * unit <= max_tile and cand > best:
                    best = cand
        d += 1
    return best * unit


def _pad2d(a, rows, cols):
    r, c = a.shape
    return jnp.pad(a, ((0, rows - r), (0, cols - c)))


def noisy_linear_kernel(x_ref, wt_ref, nwt_ref, in_n_ref, out_n_ref, beff_ref,
                        o_ref, acc_ref, nacc_ref):
    k = pl.program_id(2)

    @pl.when(k == 0)
    def _():
        acc_ref[...] = jnp.zeros_like(acc_ref)
        nacc_ref[...] = jnp.zeros_like(nacc_ref)

    x = x_ref[...]                                        # (tm, tk) bf16
    # Restructured noisy path: x @ (nW * outer(out_n, in_n)).T
    #   == ((x * in_n) @ nWt) * out_n  -- out_n scale applied once in epilogue.
    xn = x * in_n_ref[...].astype(x.dtype)                # (1, tk) broadcast
    acc_ref[...] += jnp.dot(x, wt_ref[...],
                            preferred_element_type=jnp.float32)
    nacc_ref[...] += jnp.dot(xn, nwt_ref[...],
                             preferred_element_type=jnp.float32)

    @pl.when(k == pl.num_programs(2) - 1)
    def _():
        o_ref[...] = (acc_ref[...]
                      + nacc_ref[...] * out_n_ref[...]    # (1, tn) broadcast
                      + beff_ref[...]                     # b + nb*out_n (folded)
                      ).astype(o_ref.dtype)


def prepare_noisy_linear_params(weight, bias, noisy_weight, noisy_bias):
    """Done ONCE at module init: transpose weights to [in, out], cast to bf16
    and pad only to 128-lane alignment (tiles are chosen as divisors later)."""
    out_f, in_f = weight.shape
    in_pad = _round_up(in_f, _LANE)
    out_pad = _round_up(out_f, _LANE)
    bf16 = jnp.bfloat16
    f32 = jnp.float32
    return dict(
        in_features=in_f, out_features=out_f,
        in_pad=in_pad, out_pad=out_pad,
        wt=_pad2d(weight.T.astype(bf16), in_pad, out_pad),
        nwt=_pad2d(noisy_weight.T.astype(bf16), in_pad, out_pad),
        b=_pad2d(bias.reshape(1, out_f).astype(f32), 1, out_pad),
        nb=_pad2d(noisy_bias.reshape(1, out_f).astype(f32), 1, out_pad),
    )


def noisy_linear_forward(params, x, in_noise, out_noise):
    """x: [B, in], in_noise: [in], out_noise: [out]  ->  [B, out]"""
    B, in_f = x.shape
    out_f = params["out_features"]
    in_pad, out_pad = params["in_pad"], params["out_pad"]

    # Tile selection: divisors of the (lane/sublane-aligned) padded dims.
    b_pad = _round_up(B, _SUBLANE_BF16)            # bf16 min tile is (16, 128)
    tm = _divisor_tile(b_pad, _SUBLANE_BF16, _TM_MAX)
    tn = _divisor_tile(out_pad, _LANE, _TN_MAX)
    tk = _divisor_tile(in_pad, _LANE, _TK_MAX)

    # v7x megacore: guarantee >=2 blocks along a "parallel" axis so both
    # TensorCores get work (no-op on single-TC v5e/v6e and for tiny layers).
    if (b_pad // tm) * (out_pad // tn) == 1:
        if out_pad >= 2 * _LANE:
            tn = _divisor_tile(out_pad, _LANE, out_pad // 2)
        elif b_pad >= 2 * _SUBLANE_BF16:
            tm = _divisor_tile(b_pad, _SUBLANE_BF16, b_pad // 2)

    bf16 = jnp.bfloat16
    f32 = jnp.float32

    x_p = _pad2d(x.astype(bf16), b_pad, in_pad)
    # Noise vectors are resampled every forward (torch sample_noise): pad here.
    in_n = _pad2d(in_noise.reshape(1, in_f).astype(f32), 1, in_pad)      # (1,K)
    out_n = _pad2d(out_noise.reshape(1, out_f).astype(f32), 1, out_pad)  # (1,N)
    bias_eff = params["b"] + params["nb"] * out_n                        # (1,N)

    grid = (b_pad // tm, out_pad // tn, in_pad // tk)
    grid_m, grid_n, _ = grid

    out_itemsize = jnp.dtype(x.dtype).itemsize

    # Double-buffered per-step working set -> right-sized VMEM limit.
    tile_bytes = (2 * tm * tk * 2                  # x tile, bf16, 2 bufs
                  + 2 * 2 * tk * tn * 2            # wt + nwt tiles, bf16, 2 bufs
                  + 2 * tm * tn * out_itemsize     # output tile, 2 bufs
                  + 2 * tm * tn * 4                # two f32 accumulators
                  + 2 * 4 * (tk + 2 * tn))         # small vector streams
    vmem_limit = int(min(max(2 * tile_bytes, 16 * 1024 * 1024),
                         40 * 1024 * 1024))

    cost = pl.CostEstimate(
        flops=4 * B * in_f * out_f,                               # two matmuls
        transcendentals=0,
        bytes_accessed=(grid_m * 2 * in_pad * out_pad * 2         # weight streams / M tile
                        + grid_n * b_pad * in_pad * 2             # x / N tile
                        + b_pad * out_pad * out_itemsize          # output
                        + 4 * (in_pad + 3 * out_pad)),            # vectors
    )

    out = pl.pallas_call(
        noisy_linear_kernel,
        out_shape=jax.ShapeDtypeStruct((b_pad, out_pad), x.dtype),
        grid_spec=pltpu.PrefetchScalarGridSpec(
            num_scalar_prefetch=0,
            grid=grid,
            in_specs=[
                pl.BlockSpec((tm, tk), lambda i, j, k: (i, k)),   # x (bf16)
                pl.BlockSpec((tk, tn), lambda i, j, k: (k, j)),   # W^T  (bf16)
                pl.BlockSpec((tk, tn), lambda i, j, k: (k, j)),   # nW^T (bf16)
                pl.BlockSpec((1, tk), lambda i, j, k: (0, k)),    # in_noise  (1,K) f32
                pl.BlockSpec((1, tn), lambda i, j, k: (0, j)),    # out_noise (1,N) f32
                pl.BlockSpec((1, tn), lambda i, j, k: (0, j)),    # bias_eff  (1,N) f32
            ],
            out_specs=pl.BlockSpec((tm, tn), lambda i, j, k: (i, j)),
            scratch_shapes=[pltpu.VMEM((tm, tn), jnp.float32),
                            pltpu.VMEM((tm, tn), jnp.float32)],
        ),
        compiler_params=pltpu.CompilerParams(
            dimension_semantics=("parallel", "parallel", "arbitrary"),
            vmem_limit_bytes=vmem_limit,
        ),
        cost_estimate=cost,
    )(x_p, params["wt"], params["nwt"], in_n, out_n, bias_eff)

    return out[:B, :out_f]


def reference_forward(x, weight, bias, noisy_weight, noisy_bias,
                      in_noise, out_noise):
    normal_y = x @ weight.T + bias
    noise = jnp.outer(out_noise, in_noise)
    noisy_y = x @ (noisy_weight * noise).T + noisy_bias * out_noise
    return normal_y + noisy_y


if __name__ == "__main__":
    batch = 8
    in_features = 32
    out_features = 64
    sigma0 = 0.5

    key = jax.random.PRNGKey(0)
    k_w, k_b, k_nw, k_nb, k_in, k_out, k_x = jax.random.split(key, 7)

    stdv = 1.0 / math.sqrt(in_features)
    noise_std = sigma0 / math.sqrt(in_features)

    weight = jax.random.uniform(k_w, (out_features, in_features),
                                jnp.float32, -stdv, stdv)
    bias = jax.random.uniform(k_b, (out_features,), jnp.float32, -stdv, stdv)
    noisy_weight = jax.random.uniform(k_nw, (out_features, in_features),
                                      jnp.float32, -stdv, stdv)
    noisy_bias = jax.random.uniform(k_nb, (out_features,), jnp.float32,
                                    -stdv, stdv)
    # sample_noise(): factorised Gaussian noise vectors (deterministic here).
    # TODO(synk): the in-forward torch RNG side effect (self.sample_noise() on
    # every non-volatile forward) is performed host-side; noise is an input.
    in_noise = noise_std * jax.random.normal(k_in, (in_features,), jnp.float32)
    out_noise = noise_std * jax.random.normal(k_out, (out_features,), jnp.float32)

    x = jax.random.normal(k_x, (batch, in_features), jnp.float32)

    # One-time parameter packing (transpose + bf16 cast + pad hoisted out of
    # the per-forward path).
    params = prepare_noisy_linear_params(weight, bias, noisy_weight, noisy_bias)

    y = noisy_linear_forward(params, x, in_noise, out_noise)
    y = jax.block_until_ready(y)

    y_ref = reference_forward(x, weight, bias, noisy_weight, noisy_bias,
                              in_noise, out_noise)
    assert y.shape == (batch, out_features)
    # Tolerance loosened vs the f32 version: x / weights are streamed in bf16
    # (accumulation stays f32).
    assert jnp.allclose(y, y_ref, atol=5e-2, rtol=5e-2), "mismatch vs reference"

    print("KERNEL_OK")
</pallas_src>

<mosaic_0001>
module attributes {stable_mosaic.version = 11 : i64} {
  func.func @noisy_linear_kernel(%arg0: i32, %arg1: i32, %arg2: i32, %arg3: memref<16x128xbf16, #tpu.memory_space<vmem>>, %arg4: memref<128x128xbf16, #tpu.memory_space<vmem>>, %arg5: memref<128x128xbf16, #tpu.memory_space<vmem>>, %arg6: memref<1x128xf32, #tpu.memory_space<vmem>>, %arg7: memref<1x128xf32, #tpu.memory_space<vmem>>, %arg8: memref<1x128xf32, #tpu.memory_space<vmem>>, %arg9: memref<16x128xf32, #tpu.memory_space<vmem>>, %arg10: memref<16x128xf32, #tpu.memory_space<vmem>>, %arg11: memref<16x128xf32, #tpu.memory_space<vmem>>) attributes {dimension_semantics = [#tpu.dimension_semantics<parallel>, #tpu.dimension_semantics<parallel>, #tpu.dimension_semantics<arbitrary>], iteration_bounds = array<i64: 1, 1, 1>, scalar_prefetch = 0 : i64, scratch_operands = 2 : i64, tpu.core_type = #tpu.core_type<tc>, window_params = [{transform_indices = @transform_0, window_bounds = array<i64: 16, 128>}, {transform_indices = @transform_1, window_bounds = array<i64: 128, 128>}, {transform_indices = @transform_2, window_bounds = array<i64: 128, 128>}, {transform_indices = @transform_3, window_bounds = array<i64: 1, 128>}, {transform_indices = @transform_4, window_bounds = array<i64: 1, 128>}, {transform_indices = @transform_5, window_bounds = array<i64: 1, 128>}, {transform_indices = @transform_6, window_bounds = array<i64: 16, 128>}]} {
    %c0_i32 = arith.constant 0 : i32
    %0 = arith.cmpi eq, %arg2, %c0_i32 : i32
    %1 = arith.extui %0 : i1 to i32
    %c0_i32_0 = arith.constant 0 : i32
    %2 = arith.cmpi ne, %1, %c0_i32_0 : i32
    scf.if %2 {
      %cst_19 = arith.constant 0.000000e+00 : f32
      %21 = vector.broadcast %cst_19 : f32 to vector<16x128xf32>
      %c0_20 = arith.constant 0 : index
      %c0_21 = arith.constant 0 : index
      %22 = vector.load %arg10[%c0_20, %c0_21] : memref<16x128xf32, #tpu.memory_space<vmem>>, vector<16x128xf32>
      tpu.vector_store %arg10[%c0_20, %c0_21], %21 {strides = array<i32>} : memref<16x128xf32, #tpu.memory_space<vmem>>, vector<16x128xf32>,
      %cst_22 = arith.constant 0.000000e+00 : f32
      %23 = vector.broadcast %cst_22 : f32 to vector<16x128xf32>
      %c0_23 = arith.constant 0 : index
      %c0_24 = arith.constant 0 : index
      %24 = vector.load %arg11[%c0_23, %c0_24] : memref<16x128xf32, #tpu.memory_space<vmem>>, vector<16x128xf32>
      tpu.vector_store %arg11[%c0_23, %c0_24], %23 {strides = array<i32>} : memref<16x128xf32, #tpu.memory_space<vmem>>, vector<16x128xf32>,
    } else {
    }
    %c0 = arith.constant 0 : index
    %c0_1 = arith.constant 0 : index
    %3 = vector.load %arg3[%c0, %c0_1] : memref<16x128xbf16, #tpu.memory_space<vmem>>, vector<16x128xbf16>
    %c0_2 = arith.constant 0 : index
    %c0_3 = arith.constant 0 : index
    %4 = vector.load %arg6[%c0_2, %c0_3] : memref<1x128xf32, #tpu.memory_space<vmem>>, vector<1x128xf32>
    %5 = arith.truncf %4 : vector<1x128xf32> to vector<1x128xbf16>
    %6 = vector.broadcast %5 : vector<1x128xbf16> to vector<16x128xbf16>
    %7 = arith.mulf %3, %6 : vector<16x128xbf16>
    %c0_4 = arith.constant 0 : index
    %c0_5 = arith.constant 0 : index
    %8 = vector.load %arg10[%c0_4, %c0_5] : memref<16x128xf32, #tpu.memory_space<vmem>>, vector<16x128xf32>
    %c0_6 = arith.constant 0 : index
    %c0_7 = arith.constant 0 : index
    %9 = vector.load %arg4[%c0_6, %c0_7] : memref<128x128xbf16, #tpu.memory_space<vmem>>, vector<128x128xbf16>
    %cst = arith.constant dense<0.000000e+00> : vector<16x128xf32>
    %10 = tpu.matmul %3, %9, %cst {dimension_numbers = #tpu.dot_dimension_numbers<[1], [0], [0], [1], [0, 0, 1, 1], [], []>} : vector<16x128xbf16>, vector<128x128xbf16>, vector<16x128xf32> -> vector<16x128xf32>
    %11 = arith.addf %8, %10 : vector<16x128xf32>
    %c0_8 = arith.constant 0 : index
    %c0_9 = arith.constant 0 : index
    %12 = vector.load %arg10[%c0_8, %c0_9] : memref<16x128xf32, #tpu.memory_space<vmem>>, vector<16x128xf32>
    tpu.vector_store %arg10[%c0_8, %c0_9], %11 {strides = array<i32>} : memref<16x128xf32, #tpu.memory_space<vmem>>, vector<16x128xf32>,
    %c0_10 = arith.constant 0 : index
    %c0_11 = arith.constant 0 : index
    %13 = vector.load %arg11[%c0_10, %c0_11] : memref<16x128xf32, #tpu.memory_space<vmem>>, vector<16x128xf32>
    %c0_12 = arith.constant 0 : index
    %c0_13 = arith.constant 0 : index
    %14 = vector.load %arg5[%c0_12, %c0_13] : memref<128x128xbf16, #tpu.memory_space<vmem>>, vector<128x128xbf16>
    %cst_14 = arith.constant dense<0.000000e+00> : vector<16x128xf32>
    %15 = tpu.matmul %7, %14, %cst_14 {dimension_numbers = #tpu.dot_dimension_numbers<[1], [0], [0], [1], [0, 0, 1, 1], [], []>} : vector<16x128xbf16>, vector<128x128xbf16>, vector<16x128xf32> -> vector<16x128xf32>
    %16 = arith.addf %13, %15 : vector<16x128xf32>
    %c0_15 = arith.constant 0 : index
    %c0_16 = arith.constant 0 : index
    %17 = vector.load %arg11[%c0_15, %c0_16] : memref<16x128xf32, #tpu.memory_space<vmem>>, vector<16x128xf32>
    tpu.vector_store %arg11[%c0_15, %c0_16], %16 {strides = array<i32>} : memref<16x128xf32, #tpu.memory_space<vmem>>, vector<16x128xf32>,
    %c0_i32_17 = arith.constant 0 : i32
    %18 = arith.cmpi eq, %arg2, %c0_i32_17 : i32
    %19 = arith.extui %18 : i1 to i32
    %c0_i32_18 = arith.constant 0 : i32
    %20 = arith.cmpi ne, %19, %c0_i32_18 : i32
    scf.if %20 {
      %c0_19 = arith.constant 0 : index
      %c0_20 = arith.constant 0 : index
      %21 = vector.load %arg10[%c0_19, %c0_20] : memref<16x128xf32, #tpu.memory_space<vmem>>, vector<16x128xf32>
      %c0_21 = arith.constant 0 : index
      %c0_22 = arith.constant 0 : index
      %22 = vector.load %arg11[%c0_21, %c0_22] : memref<16x128xf32, #tpu.memory_space<vmem>>, vector<16x128xf32>
      %c0_23 = arith.constant 0 : index
      %c0_24 = arith.constant 0 : index
      %23 = vector.load %arg7[%c0_23, %c0_24] : memref<1x128xf32, #tpu.memory_space<vmem>>, vector<1x128xf32>
      %24 = vector.broadcast %23 : vector<1x128xf32> to vector<16x128xf32>
      %25 = arith.mulf %22, %24 : vector<16x128xf32>
      %26 = arith.addf %21, %25 : vector<16x128xf32>
      %c0_25 = arith.constant 0 : index
      %c0_26 = arith.constant 0 : index
      %27 = vector.load %arg8[%c0_25, %c0_26] : memref<1x128xf32, #tpu.memory_space<vmem>>, vector<1x128xf32>
      %28 = vector.broadcast %27 : vector<1x128xf32> to vector<16x128xf32>
      %29 = arith.addf %26, %28 : vector<16x128xf32>
      %c0_27 = arith.constant 0 : index
      %c0_28 = arith.constant 0 : index
      %30 = vector.load %arg9[%c0_27, %c0_28] : memref<16x128xf32, #tpu.memory_space<vmem>>, vector<16x128xf32>
      tpu.vector_store %arg9[%c0_27, %c0_28], %29 {strides = array<i32>} : memref<16x128xf32, #tpu.memory_space<vmem>>, vector<16x128xf32>,
    } else {
    }
    return
  }
  func.func @transform_0(%arg0: i32, %arg1: i32, %arg2: i32) -> (i32, i32) {
    %c0_i32 = arith.constant 0 : i32
    return %arg0, %arg2 : i32, i32
  }
  func.func @transform_1(%arg0: i32, %arg1: i32, %arg2: i32) -> (i32, i32) {
    %c0_i32 = arith.constant 0 : i32
    return %arg2, %arg1 : i32, i32
  }
  func.func @transform_2(%arg0: i32, %arg1: i32, %arg2: i32) -> (i32, i32) {
    %c0_i32 = arith.constant 0 : i32
    return %arg2, %arg1 : i32, i32
  }
  func.func @transform_3(%arg0: i32, %arg1: i32, %arg2: i32) -> (i32, i32) {
    %c0_i32 = arith.constant 0 : i32
    %c0_i32_0 = arith.constant 0 : i32
    return %c0_i32, %arg2 : i32, i32
  }
  func.func @transform_4(%arg0: i32, %arg1: i32, %arg2: i32) -> (i32, i32) {
    %c0_i32 = arith.constant 0 : i32
    %c0_i32_0 = arith.constant 0 : i32
    return %c0_i32, %arg1 : i32, i32
  }
  func.func @transform_5(%arg0: i32, %arg1: i32, %arg2: i32) -> (i32, i32) {
    %c0_i32 = arith.constant 0 : i32
    %c0_i32_0 = arith.constant 0 : i32
    return %c0_i32, %arg1 : i32, i32
  }
  func.func @transform_6(%arg0: i32, %arg1: i32, %arg2: i32) -> (i32, i32) {
    %c0_i32 = arith.constant 0 : i32
    return %arg0, %arg1 : i32, i32
  }
}

</mosaic_0001>

<llo_original>
// kernel: tpu_custom_call.1
$region0: #{tpu_custom_call.1}
  #allocation0 [shape = 'u32[]', space=smem, size = 0x4, offset = 0x4, fixed_abs, tag = 'smem constant byte address 0x4 - core index']
  #allocation1 [shape = 'u32[144,128]{1,0:T(1,128)}', space=vmem, size = 0x12000, scoped, tag = 'internal scratch']
  #allocation2 [shape = 'f32[16,128]{1,0:T(8,128)}', space=vmem, size = 0x2000, scoped, tag = 'scratch operand']
  #allocation3 [shape = 'f32[16,128]{1,0:T(8,128)}', space=vmem, size = 0x2000, scoped, tag = 'scratch operand']
  %s0 = inlined_call_operand.hbm [shape: bf16[16,128], index: 0, kind: input, shape index: {}]
  %s1 = inlined_call_operand.hbm [shape: bf16[128,128], index: 1, kind: input, shape index: {}]
  %s2 = inlined_call_operand.hbm [shape: bf16[128,128], index: 2, kind: input, shape index: {}]
  %s3 = inlined_call_operand.vmem [shape: f32[1,128], index: 3, kind: input, shape index: {}]
  %s4 = inlined_call_operand.vmem [shape: f32[1,128], index: 4, kind: input, shape index: {}]
  %s5 = inlined_call_operand.vmem [shape: f32[1,128], index: 5, kind: input, shape index: {}]
  %s6 = inlined_call_operand.hbm [shape: f32[16,128], index: 6, kind: output, shape index: {}]
  %s7 = sld [smem:[#allocation0]]
  $region54: #{tpu_custom_call.1} parent=0
    _
  %s9 = ssub.s32 1, %s7
  %s10 = scalar_select 0, %s9, %s7
  $region1: #{tpu_custom_call.1} parent=0
    #allocation4 [shape = 'u8[4096]{0}', space=vmem, size = 0x1000, scoped, tag = 'input window, operand 0, single buffered']
    #allocation5 [shape = 's32[1]{0}', space=sflag, size = 0x4, scoped, tag = 'scoped memory for tpu_custom_call.1']
    #allocation6 [shape = 's32[1]{0}', space=sflag, size = 0x4, scoped, tag = 'scoped memory for tpu_custom_call.1']
    #allocation7 [shape = 'u8[32768]{0}', space=vmem, size = 0x8000, scoped, tag = 'input window, operand 1, single buffered']
    #allocation8 [shape = 's32[1]{0}', space=sflag, size = 0x4, scoped, tag = 'scoped memory for tpu_custom_call.1']
    #allocation9 [shape = 'u8[32768]{0}', space=vmem, size = 0x8000, scoped, tag = 'input window, operand 2, single buffered']
    #allocation10 [shape = 'u8[8192]{0}', space=vmem, size = 0x2000, scoped, tag = 'output window, operand 0, single buffered']
    %11 = vsyncpa [#allocation5], 0
    %12 = vsyncpa [#allocation8], 0
    %13 = vsyncpa [#allocation6], 0
    // Predicated region
    $region2: #{tpu_custom_call.1} parent=1 // pred_check
      _
    $region3: #{tpu_custom_call.1} parent=1 // pred_check_branch
      %15 = sbr.rel (0) target = $region5
    $region4: #{tpu_custom_call.1} parent=1 // pred_region
      %s17 = ssub.s32 128, 128
      %18 = vsyncadd [#allocation5], %s17
      %s19 = sshll.u32 [#allocation4], 4
      %s20 = int_to_ptr.vmem [resolvable:$true] %s19
      %25 = dma.hbm_to_vmem [thread:$0]  %s0, 128, %s20, [#allocation5], 64, 64, 4
    $region5: #{tpu_custom_call.1} parent=1 // pred_fallthru
      _
    // Predicated region
    $region6: #{tpu_custom_call.1} parent=1 // pred_check
      _
    $region7: #{tpu_custom_call.1} parent=1 // pred_check_branch
      %27 = sbr.rel (0) target = $region9
    $region8: #{tpu_custom_call.1} parent=1 // pred_region
      %s29 = ssub.s32 1024, 1024
      %30 = vsyncadd [#allocation8], %s29
      %s31 = sshll.u32 [#allocation7], 4
      %s32 = int_to_ptr.vmem [resolvable:$true] %s31
      %37 = dma.hbm_to_vmem [thread:$0]  %s1, 1024, %s32, [#allocation8], 64, 64, 4
    $region9: #{tpu_custom_call.1} parent=1 // pred_fallthru
      _
    // Predicated region
    $region10: #{tpu_custom_call.1} parent=1 // pred_check
      _
    $region11: #{tpu_custom_call.1} parent=1 // pred_check_branch
      %39 = sbr.rel (0) target = $region13
    $region12: #{tpu_custom_call.1} parent=1 // pred_region
      %s41 = ssub.s32 1024, 1024
      %42 = vsyncadd [#allocation8], %s41
      %s43 = sshll.u32 [#allocation9], 4
      %s44 = int_to_ptr.vmem [resolvable:$true] %s43
      %49 = dma.hbm_to_vmem [thread:$0]  %s2, 1024, %s44, [#allocation8], 64, 64, 4
    $region13: #{tpu_custom_call.1} parent=1 // pred_fallthru
      _
    // Predicated region
    $region14: #{tpu_custom_call.1} parent=1 // pred_check
      _
    $region15: #{tpu_custom_call.1} parent=1 // pred_check_branch
      %51 = sbr.rel (0) target = $region17
    $region16: #{tpu_custom_call.1} parent=1 // pred_region
      _
    $region17: #{tpu_custom_call.1} parent=1 // pred_fallthru
      _
    // Predicated region
    $region18: #{tpu_custom_call.1} parent=1 // pred_check
      _
    $region19: #{tpu_custom_call.1} parent=1 // pred_check_branch
      %53 = sbr.rel (0) target = $region21
    $region20: #{tpu_custom_call.1} parent=1 // pred_region
      _
    $region21: #{tpu_custom_call.1} parent=1 // pred_fallthru
      _
    // Predicated region
    $region22: #{tpu_custom_call.1} parent=1 // pred_check
      _
    $region23: #{tpu_custom_call.1} parent=1 // pred_check_branch
      %55 = sbr.rel (0) target = $region25
    $region24: #{tpu_custom_call.1} parent=1 // pred_region
      _
    $region25: #{tpu_custom_call.1} parent=1 // pred_fallthru
      _
    // Predicated region
    $region26: #{tpu_custom_call.1} parent=1 // pred_check
      _
    $region27: #{tpu_custom_call.1} parent=1 // pred_check_branch
      %57 = sbr.rel (0) target = $region29
    $region28: #{tpu_custom_call.1} parent=1 // pred_region
      %58 = dma.done [#allocation5], 128
    $region29: #{tpu_custom_call.1} parent=1 // pred_fallthru
      _
    // Predicated region
    $region30: #{tpu_custom_call.1} parent=1 // pred_check
      _
    $region31: #{tpu_custom_call.1} parent=1 // pred_check_branch
      %60 = sbr.rel (0) target = $region33
    $region32: #{tpu_custom_call.1} parent=1 // pred_region
      %61 = dma.done [#allocation8], 1024
    $region33: #{tpu_custom_call.1} parent=1 // pred_fallthru
      _
    // Predicated region
    $region34: #{tpu_custom_call.1} parent=1 // pred_check
      _
    $region35: #{tpu_custom_call.1} parent=1 // pred_check_branch
      %63 = sbr.rel (0) target = $region37
    $region36: #{tpu_custom_call.1} parent=1 // pred_region
      %64 = dma.done [#allocation8], 1024
    $region37: #{tpu_custom_call.1} parent=1 // pred_fallthru
      _
    %p66 = scmp.eq.s32.totalorder 0, 0
    // Predicated region
    $region38: #{tpu_custom_call.1} parent=1 // pred_check
      %p67 = pneg %p66
    $region39: #{tpu_custom_call.1} parent=1 // pred_check_branch
      %69 = sbr.rel (%p67) target = $region41
    $region40: #{tpu_custom_call.1} parent=1 // pred_region
      %70 = vst [vmem:[#allocation2] sm:$0xff] 0.0
      %71 = vst [vmem:[#allocation2 + $0x8] sm:$0xff] 0.0
      %72 = vst [vmem:[#allocation3] sm:$0xff] 0.0
      %73 = vst [vmem:[#allocation3 + $0x8] sm:$0xff] 0.0
    $region41: #{tpu_custom_call.1} parent=1 // pred_fallthru
      _
    %v74 = vld [vmem:[#allocation4] sm:$0xf]
    %v75 = vld [vmem:[#allocation4 + $0x4] sm:$0xf]
    %v76 = vld [vmem:[%s3] sm:$0x1]
    %v77 = vpack.c.bf16 %v76, %v76
    %v79 = vpack.i.b16 %v77, %v77
    %v81 = vlaneseq
    %v82 = vshrl.u32 %v81, 7
    %v83 = vsub.s32 0, %v82
    %v84 = vrot.slane %v79, %v83
    %v86 = vunpack.c.l.b16 %v84
    %v87 = vpack.c.b16 %v86, %v86
    %v89 = vmul.bf16 %v74, %v87
    %v90 = vmul.bf16 %v75, %v87
    %v91 = vld [vmem:[#allocation2] sm:$0xff]
    %v92 = vld [vmem:[#allocation2 + $0x8] sm:$0xff]
    %v93 = vld [vmem:[#allocation7] sm:$0xf]
    %v94 = vld [vmem:[#allocation7 + $0x4] sm:$0xf]
    %v95 = vld [vmem:[#allocation7 + $0x8] sm:$0xf]
    %v96 = vld [vmem:[#allocation7 + $0xc] sm:$0xf]
    %v97 = vld [vmem:[#allocation7 + $0x10] sm:$0xf]
    %v98 = vld [vmem:[#allocation7 + $0x14] sm:$0xf]
    %v99 = vld [vmem:[#allocation7 + $0x18] sm:$0xf]
    %v100 = vld [vmem:[#allocation7 + $0x1c] sm:$0xf]
    %v101 = vld [vmem:[#allocation7 + $0x20] sm:$0xf]
    %v102 = vld [vmem:[#allocation7 + $0x24] sm:$0xf]
    %v103 = vld [vmem:[#allocation7 + $0x28] sm:$0xf]
    %v104 = vld [vmem:[#allocation7 + $0x2c] sm:$0xf]
    %v105 = vld [vmem:[#allocation7 + $0x30] sm:$0xf]
    %v106 = vld [vmem:[#allocation7 + $0x34] sm:$0xf]
    %v107 = vld [vmem:[#allocation7 + $0x38] sm:$0xf]
    %v108 = vld [vmem:[#allocation7 + $0x3c] sm:$0xf]
    %v111 = vunpack.c.l.b16 %v74
    %v112 = vunpack.c.l.b16 %v75
    %v113 = vpack.c.b16 %v112, %v111
    %v131 = vunpack.c.l.b16 %v93
    %v132 = vunpack.c.l.b16 %v94
    %v133 = vunpack.c.l.b16 %v95
    %v134 = vunpack.c.l.b16 %v96
    %v135 = vunpack.c.l.b16 %v97
    %v136 = vunpack.c.l.b16 %v98
    %v137 = vunpack.c.l.b16 %v99
    %v138 = vunpack.c.l.b16 %v100
    %v139 = vunpack.c.l.b16 %v101
    %v140 = vunpack.c.l.b16 %v102
    %v141 = vunpack.c.l.b16 %v103
    %v142 = vunpack.c.l.b16 %v104
    %v143 = vunpack.c.l.b16 %v105
    %v144 = vunpack.c.l.b16 %v106
    %v145 = vunpack.c.l.b16 %v107
    %v146 = vunpack.c.l.b16 %v108
    %v147 = vpack.c.b16 %v132, %v131
    %v148 = vpack.c.b16 %v134, %v133
    %v149 = vpack.c.b16 %v136, %v135
    %v150 = vpack.c.b16 %v138, %v137
    %v151 = vpack.c.b16 %v140, %v139
    %v152 = vpack.c.b16 %v142, %v141
    %v153 = vpack.c.b16 %v144, %v143
    %v154 = vpack.c.b16 %v146, %v145
    %163 = vmatprep.subr.bf16.mxu0 0
    %164 = vmatpush1.bf16.msra.mxu0 %v147
    %165 = vmatprep.subr.bf16.mxu0 0
    %166 = vmatpush1.bf16.msra.mxu0 %v148
    %167 = vmatprep.subr.bf16.mxu0 0
    %168 = vmatpush1.bf16.msra.mxu0 %v149
    %169 = vmatprep.subr.bf16.mxu0 0
    %170 = vmatpush1.bf16.msra.mxu0 %v150
    %171 = vmatprep.subr.bf16.mxu0 0
    %172 = vmatpush1.bf16.msra.mxu0 %v151
    %173 = vmatprep.subr.bf16.mxu0 0
    %174 = vmatpush1.bf16.msra.mxu0 %v152
    %175 = vmatprep.subr.bf16.mxu0 0
    %176 = vmatpush1.bf16.msra.mxu0 %v153
    %177 = vmatprep.subr.bf16.mxu0 0
    %178 = vmatpush1.bf16.msra.mxu0 %v154
    %179 = vmatprep.subr.bf16.mxu0 0
    %180 = vmatpush1.bf16.msra.mxu0 0
    %181 = vmatprep.subr.bf16.mxu0 0
    %182 = vmatpush1.bf16.msra.mxu0 0
    %183 = vmatprep.subr.bf16.mxu0 0
    %184 = vmatpush1.bf16.msra.mxu0 0
    %185 = vmatprep.subr.bf16.mxu0 0
    %186 = vmatpush1.bf16.msra.mxu0 0
    %187 = vmatprep.subr.bf16.mxu0 0
    %188 = vmatpush1.bf16.msra.mxu0 0
    %189 = vmatprep.subr.bf16.mxu0 0
    %190 = vmatpush1.bf16.msra.mxu0 0
    %191 = vmatprep.subr.bf16.mxu0 0
    %192 = vmatpush1.bf16.msra.mxu0 0
    %193 = vmatprep.subr.bf16.mxu0 0
    %194 = vmatpush1.bf16.msra.mxu0 0
    %195 = vmatprep.mubr.bf16.mxu0 0
    %196 = vmatmul.mubr.bf16.gmra.mrb[0].mxu0 %v113
    %v197 = vpop.f32.mrb[0].mxu0
    %v198 = vadd.f32 0.0, %v197
    %v199 = vpop.f32.mrb[0].mxu0
    %v200 = vpop.f32.mrb[0].mxu0
    %v201 = vadd.f32 0.0, %v200
    %v202 = vpop.f32.mrb[0].mxu0
    %203 = vdwg.mxu0
    %v204 = vadd.f32 %v91, %v198
    %v205 = vadd.f32 %v92, %v201
    %206 = vst [vmem:[#allocation2] sm:$0xff] %v204
    %207 = vst [vmem:[#allocation2 + $0x8] sm:$0xff] %v205
    %v208 = vld [vmem:[#allocation3] sm:$0xff]
    %v209 = vld [vmem:[#allocation3 + $0x8] sm:$0xff]
    %v210 = vld [vmem:[#allocation9] sm:$0xf]
    %v211 = vld [vmem:[#allocation9 + $0x4] sm:$0xf]
    %v212 = vld [vmem:[#allocation9 + $0x8] sm:$0xf]
    %v213 = vld [vmem:[#allocation9 + $0xc] sm:$0xf]
    %v214 = vld [vmem:[#allocation9 + $0x10] sm:$0xf]
    %v215 = vld [vmem:[#allocation9 + $0x14] sm:$0xf]
    %v216 = vld [vmem:[#allocation9 + $0x18] sm:$0xf]
    %v217 = vld [vmem:[#allocation9 + $0x1c] sm:$0xf]
    %v218 = vld [vmem:[#allocation9 + $0x20] sm:$0xf]
    %v219 = vld [vmem:[#allocation9 + $0x24] sm:$0xf]
    %v220 = vld [vmem:[#allocation9 + $0x28] sm:$0xf]
    %v221 = vld [vmem:[#allocation9 + $0x2c] sm:$0xf]
    %v222 = vld [vmem:[#allocation9 + $0x30] sm:$0xf]
    %v223 = vld [vmem:[#allocation9 + $0x34] sm:$0xf]
    %v224 = vld [vmem:[#allocation9 + $0x38] sm:$0xf]
    %v225 = vld [vmem:[#allocation9 + $0x3c] sm:$0xf]
    %v228 = vunpack.c.l.b16 %v89
    %v229 = vunpack.c.l.b16 %v90
    %v230 = vpack.c.b16 %v229, %v228
    %v248 = vunpack.c.l.b16 %v210
    %v249 = vunpack.c.l.b16 %v211
    %v250 = vunpack.c.l.b16 %v212
    %v251 = vunpack.c.l.b16 %v213
    %v252 = vunpack.c.l.b16 %v214
    %v253 = vunpack.c.l.b16 %v215
    %v254 = vunpack.c.l.b16 %v216
    %v255 = vunpack.c.l.b16 %v217
    %v256 = vunpack.c.l.b16 %v218
    %v257 = vunpack.c.l.b16 %v219
    %v258 = vunpack.c.l.b16 %v220
    %v259 = vunpack.c.l.b16 %v221
    %v260 = vunpack.c.l.b16 %v222
    %v261 = vunpack.c.l.b16 %v223
    %v262 = vunpack.c.l.b16 %v224
    %v263 = vunpack.c.l.b16 %v225
    %v264 = vpack.c.b16 %v249, %v248
    %v265 = vpack.c.b16 %v251, %v250
    %v266 = vpack.c.b16 %v253, %v252
    %v267 = vpack.c.b16 %v255, %v254
    %v268 = vpack.c.b16 %v257, %v256
    %v269 = vpack.c.b16 %v259, %v258
    %v270 = vpack.c.b16 %v261, %v260
    %v271 = vpack.c.b16 %v263, %v262
    %280 = vmatprep.subr.bf16.mxu0 0
    %281 = vmatpush1.bf16.msra.mxu0 %v264
    %282 = vmatprep.subr.bf16.mxu0 0
    %283 = vmatpush1.bf16.msra.mxu0 %v265
    %284 = vmatprep.subr.bf16.mxu0 0
    %285 = vmatpush1.bf16.msra.mxu0 %v266
    %286 = vmatprep.subr.bf16.mxu0 0
    %287 = vmatpush1.bf16.msra.mxu0 %v267
    %288 = vmatprep.subr.bf16.mxu0 0
    %289 = vmatpush1.bf16.msra.mxu0 %v268
    %290 = vmatprep.subr.bf16.mxu0 0
    %291 = vmatpush1.bf16.msra.mxu0 %v269
    %292 = vmatprep.subr.bf16.mxu0 0
    %293 = vmatpush1.bf16.msra.mxu0 %v270
    %294 = vmatprep.subr.bf16.mxu0 0
    %295 = vmatpush1.bf16.msra.mxu0 %v271
    %296 = vmatprep.subr.bf16.mxu0 0
    %297 = vmatpush1.bf16.msra.mxu0 0
    %298 = vmatprep.subr.bf16.mxu0 0
    %299 = vmatpush1.bf16.msra.mxu0 0
    %300 = vmatprep.subr.bf16.mxu0 0
    %301 = vmatpush1.bf16.msra.mxu0 0
    %302 = vmatprep.subr.bf16.mxu0 0
    %303 = vmatpush1.bf16.msra.mxu0 0
    %304 = vmatprep.subr.bf16.mxu0 0
    %305 = vmatpush1.bf16.msra.mxu0 0
    %306 = vmatprep.subr.bf16.mxu0 0
    %307 = vmatpush1.bf16.msra.mxu0 0
    %308 = vmatprep.subr.bf16.mxu0 0
    %309 = vmatpush1.bf16.msra.mxu0 0
    %310 = vmatprep.subr.bf16.mxu0 0
    %311 = vmatpush1.bf16.msra.mxu0 0
    %312 = vmatprep.mubr.bf16.mxu0 0
    %313 = vmatmul.mubr.bf16.gmra.mrb[0].mxu0 %v230
    %v314 = vpop.f32.mrb[0].mxu0
    %v315 = vadd.f32 0.0, %v314
    %v316 = vpop.f32.mrb[0].mxu0
    %v317 = vpop.f32.mrb[0].mxu0
    %v318 = vadd.f32 0.0, %v317
    %v319 = vpop.f32.mrb[0].mxu0
    %320 = vdwg.mxu0
    %v321 = vadd.f32 %v208, %v315
    %v322 = vadd.f32 %v209, %v318
    %323 = vst [vmem:[#allocation3] sm:$0xff] %v321
    %324 = vst [vmem:[#allocation3 + $0x8] sm:$0xff] %v322
    // Predicated region
    $region42: #{tpu_custom_call.1} parent=1 // pred_check
      %p325 = pneg %p66
    $region43: #{tpu_custom_call.1} parent=1 // pred_check_branch
      %327 = sbr.rel (%p325) target = $region45
    $region44: #{tpu_custom_call.1} parent=1 // pred_region
      %v328 = vld [vmem:[#allocation2] sm:$0xff]
      %v329 = vld [vmem:[#allocation2 + $0x8] sm:$0xff]
      %v330 = vld [vmem:[#allocation3] sm:$0xff]
      %v331 = vld [vmem:[#allocation3 + $0x8] sm:$0xff]
      %v332 = vld [vmem:[%s4] sm:$0x1]
      %v334 = vlaneseq
      %v335 = vshrl.u32 %v334, 7
      %v336 = vsub.s32 0, %v335
      %v337 = vrot.slane %v332, %v336
      %v339 = vmul.f32 %v330, %v337
      %v340 = vmul.f32 %v331, %v337
      %v341 = vadd.f32 %v328, %v339
      %v342 = vadd.f32 %v329, %v340
      %v343 = vld [vmem:[%s5] sm:$0x1]
      %v345 = vlaneseq
      %v346 = vshrl.u32 %v345, 7
      %v347 = vsub.s32 0, %v346
      %v348 = vrot.slane %v343, %v347
      %v350 = vadd.f32 %v341, %v348
      %v351 = vadd.f32 %v342, %v348
      %352 = vst [vmem:[#allocation10] sm:$0xff] %v350
      %353 = vst [vmem:[#allocation10 + $0x8] sm:$0xff] %v351
    $region45: #{tpu_custom_call.1} parent=1 // pred_fallthru
      _
    // Predicated region
    $region46: #{tpu_custom_call.1} parent=1 // pred_check
      _
    $region47: #{tpu_custom_call.1} parent=1 // pred_check_branch
      %355 = sbr.rel (0) target = $region49
    $region48: #{tpu_custom_call.1} parent=1 // pred_region
      %s357 = ssub.s32 256, 256
      %358 = vsyncadd [#allocation6], %s357
      %s359 = sshll.u32 [#allocation10], 4
      %s360 = int_to_ptr.vmem [resolvable:$true] %s359
      %365 = dma.vmem_to_hbm [thread:$0]  %s360, 256, %s6, [#allocation6], 128, 128, 8
    $region49: #{tpu_custom_call.1} parent=1 // pred_fallthru
      _
    // Predicated region
    $region50: #{tpu_custom_call.1} parent=1 // pred_check
      _
    $region51: #{tpu_custom_call.1} parent=1 // pred_check_branch
      %367 = sbr.rel (0) target = $region53
    $region52: #{tpu_custom_call.1} parent=1 // pred_region
      %368 = dma.done [#allocation6], 256
    $region53: #{tpu_custom_call.1} parent=1 // pred_fallthru
      _
    %369 = vsyncpa [#allocation5], 1
    %370 = vsyncpa [#allocation8], 1
    %371 = vsyncpa [#allocation6], 1

</llo_original>
